<compile_context>
chip_gen: v7x
topology: tpu7x:2x2x1
jax: 0.10.0
libtpu: 0.0.40
codegen_flags: <defaults>
</compile_context>

<pallas_src>
import jax
import jax.numpy as jnp
from jax.experimental import pallas as pl
from jax.experimental.pallas import tpu as pltpu


def _round_up(x, m):
    return ((x + m - 1) // m) * m


def _pick_tile(dim, align, cap):
    """Largest `align`-multiple tile <= cap that minimizes padding of `dim`."""
    padded = _round_up(dim, align)
    if padded <= cap:
        return padded
    t = cap - (cap % align)
    while t >= align:
        if padded % t == 0:      # divides the aligned extent -> no extra pad
            return t
        t -= align
    return align


def _matmul_single_k_kernel(a_ref, b_ref, o_ref):
    # Whole K fits in one block: single MXU dot, direct lane-dense store.
    o_ref[...] = jnp.dot(
        a_ref[...].astype(jnp.bfloat16),
        b_ref[...],
        preferred_element_type=jnp.float32,
    ).astype(o_ref.dtype)


def _matmul_acc_kernel(a_ref, b_ref, o_ref, acc_ref):
    # K-split path: f32 VMEM accumulator across the (last, "arbitrary") K axis.
    @pl.when(pl.program_id(2) == 0)
    def _():
        acc_ref[...] = jnp.zeros_like(acc_ref)

    acc_ref[...] += jnp.dot(
        a_ref[...].astype(jnp.bfloat16),
        b_ref[...],
        preferred_element_type=jnp.float32,
    )

    @pl.when(pl.program_id(2) == pl.num_programs(2) - 1)
    def _():
        o_ref[...] = acc_ref[...].astype(o_ref.dtype)


def random_projection_matmul(x, w_t):
    """Computes x @ w_t with a tiled Pallas TPU matmul.

    x:   (M, K) float32
    w_t: (K, N) bfloat16  (frozen projection weight, already transposed once)
    """
    M, K = x.shape
    K2, N = w_t.shape
    assert K == K2

    # Padding-minimizing, MXU/DMA-friendly tiles. tm cap keeps M // tm small
    # for typical batch sizes, so the weight is streamed from HBM only once.
    tm = _pick_tile(M, 8, 256)
    tn = _pick_tile(N, 128, 512)
    tk = _pick_tile(K, 128, 1024)

    Mp, Kp, Np = _round_up(M, tm), _round_up(K, tk), _round_up(N, tn)

    if (Mp, Kp) != (M, K):
        x = jnp.pad(x, ((0, Mp - M), (0, Kp - K)))
    if (Kp, Np) != (K, N):
        w_t = jnp.pad(w_t, ((0, Kp - K), (0, Np - N)))

    gm, gn, gk = Mp // tm, Np // tn, Kp // tk

    cost = pl.CostEstimate(
        flops=2 * Mp * Np * Kp,
        transcendentals=0,
        bytes_accessed=Mp * Kp * 4 + Kp * Np * 2 + Mp * Np * 4,
    )

    if gk == 1:
        # Single K block: no scratch accumulator, no reduction axis.
        out = pl.pallas_call(
            _matmul_single_k_kernel,
            out_shape=jax.ShapeDtypeStruct((Mp, Np), jnp.float32),
            grid_spec=pltpu.PrefetchScalarGridSpec(
                num_scalar_prefetch=0,
                grid=(gm, gn),
                in_specs=[
                    pl.BlockSpec((tm, Kp), lambda i, j: (i, 0)),
                    pl.BlockSpec((Kp, tn), lambda i, j: (0, j)),
                ],
                out_specs=pl.BlockSpec((tm, tn), lambda i, j: (i, j)),
            ),
            compiler_params=pltpu.CompilerParams(
                dimension_semantics=("parallel", "parallel")
            ),
            cost_estimate=cost,
        )(x, w_t)
    else:
        out = pl.pallas_call(
            _matmul_acc_kernel,
            out_shape=jax.ShapeDtypeStruct((Mp, Np), jnp.float32),
            grid_spec=pltpu.PrefetchScalarGridSpec(
                num_scalar_prefetch=0,
                grid=(gm, gn, gk),
                in_specs=[
                    pl.BlockSpec((tm, tk), lambda i, j, k: (i, k)),
                    pl.BlockSpec((tk, tn), lambda i, j, k: (k, j)),
                ],
                out_specs=pl.BlockSpec((tm, tn), lambda i, j, k: (i, j)),
                scratch_shapes=[pltpu.VMEM((tm, tn), jnp.float32)],
            ),
            compiler_params=pltpu.CompilerParams(
                dimension_semantics=("parallel", "parallel", "arbitrary")
            ),
            cost_estimate=cost,
        )(x, w_t)

    if (Mp, Np) != (M, N):
        out = out[:M, :N]
    return out


class RandomProjection:
    """JAX equivalent of RandomProjectionModule (frozen Gaussian weight)."""

    def __init__(self, input_features, output_features, mean=0.0, std=1.0,
                 *, key):
        self.input_features = input_features
        self.output_features = output_features
        # PyTorch-layout frozen Gaussian weight (kept for reference checks).
        self.weight = mean + std * jax.random.normal(
            key, (output_features, input_features), dtype=jnp.float32
        )
        # Kernel operand materialized ONCE (weight is frozen):
        #  - transposed to (K, N) so no per-call transpose pass is needed,
        #  - stored in bfloat16 to halve weight HBM bytes on every forward.
        self.w_t = jnp.transpose(self.weight).astype(jnp.bfloat16)

    def __call__(self, x):
        return random_projection_matmul(x, self.w_t)


if __name__ == "__main__":
    key = jax.random.PRNGKey(0)
    k_w, k_x = jax.random.split(key)

    batch = 8
    input_features = 256
    output_features = 128

    module = RandomProjection(input_features, output_features,
                              mean=0.0, std=1.0, key=k_w)
    x = jax.random.normal(k_x, (batch, input_features), dtype=jnp.float32)

    y = module(x)
    jax.block_until_ready(y)

    # Reference with identical bf16-rounded operands, f32 accumulation.
    x_ref = x.astype(jnp.bfloat16).astype(jnp.float32)
    w_ref = module.w_t.astype(jnp.float32)
    y_ref = x_ref @ w_ref

    assert y.shape == (batch, output_features)
    assert jnp.allclose(y, y_ref, atol=1e-2, rtol=1e-2)

    print("KERNEL_OK")
</pallas_src>

<mosaic_0001>
module attributes {stable_mosaic.version = 11 : i64} {
  func.func @_matmul_single_k_kernel(%arg0: i32, %arg1: i32, %arg2: memref<8x256xf32, #tpu.memory_space<vmem>>, %arg3: memref<256x128xbf16, #tpu.memory_space<vmem>>, %arg4: memref<8x128xf32, #tpu.memory_space<vmem>>) attributes {dimension_semantics = [#tpu.dimension_semantics<parallel>, #tpu.dimension_semantics<parallel>], iteration_bounds = array<i64: 1, 1>, scalar_prefetch = 0 : i64, scratch_operands = 0 : i64, tpu.core_type = #tpu.core_type<tc>, window_params = [{transform_indices = @transform_0, window_bounds = array<i64: 8, 256>}, {transform_indices = @transform_1, window_bounds = array<i64: 256, 128>}, {transform_indices = @transform_2, window_bounds = array<i64: 8, 128>}]} {
    %c0 = arith.constant 0 : index
    %c0_0 = arith.constant 0 : index
    %0 = vector.load %arg2[%c0, %c0_0] : memref<8x256xf32, #tpu.memory_space<vmem>>, vector<8x256xf32>
    %1 = arith.truncf %0 : vector<8x256xf32> to vector<8x256xbf16>
    %c0_1 = arith.constant 0 : index
    %c0_2 = arith.constant 0 : index
    %2 = vector.load %arg3[%c0_1, %c0_2] : memref<256x128xbf16, #tpu.memory_space<vmem>>, vector<256x128xbf16>
    %cst = arith.constant dense<0.000000e+00> : vector<8x128xf32>
    %3 = tpu.matmul %1, %2, %cst {dimension_numbers = #tpu.dot_dimension_numbers<[1], [0], [0], [1], [0, 0, 1, 1], [], []>} : vector<8x256xbf16>, vector<256x128xbf16>, vector<8x128xf32> -> vector<8x128xf32>
    %c0_3 = arith.constant 0 : index
    %c0_4 = arith.constant 0 : index
    %4 = vector.load %arg4[%c0_3, %c0_4] : memref<8x128xf32, #tpu.memory_space<vmem>>, vector<8x128xf32>
    tpu.vector_store %arg4[%c0_3, %c0_4], %3 {strides = array<i32>} : memref<8x128xf32, #tpu.memory_space<vmem>>, vector<8x128xf32>,
    return
  }
  func.func @transform_0(%arg0: i32, %arg1: i32) -> (i32, i32) {
    %c0_i32 = arith.constant 0 : i32
    %c0_i32_0 = arith.constant 0 : i32
    return %arg0, %c0_i32 : i32, i32
  }
  func.func @transform_1(%arg0: i32, %arg1: i32) -> (i32, i32) {
    %c0_i32 = arith.constant 0 : i32
    %c0_i32_0 = arith.constant 0 : i32
    return %c0_i32, %arg1 : i32, i32
  }
  func.func @transform_2(%arg0: i32, %arg1: i32) -> (i32, i32) {
    %c0_i32 = arith.constant 0 : i32
    return %arg0, %arg1 : i32, i32
  }
}

</mosaic_0001>

<llo_original>
// kernel: tpu_custom_call.1
$region0: #{tpu_custom_call.1}
  #allocation0 [shape = 'u32[]', space=smem, size = 0x4, offset = 0x4, fixed_abs, tag = 'smem constant byte address 0x4 - core index']
  #allocation1 [shape = 'u32[144,128]{1,0:T(1,128)}', space=vmem, size = 0x12000, scoped, tag = 'internal scratch']
  %s0 = inlined_call_operand.hbm [shape: f32[8,256], index: 0, kind: input, shape index: {}]
  %s1 = inlined_call_operand.hbm [shape: bf16[256,128], index: 1, kind: input, shape index: {}]
  %s2 = inlined_call_operand.hbm [shape: f32[8,128], index: 2, kind: output, shape index: {}]
  %s3 = sld [smem:[#allocation0]]
  $region26: #{tpu_custom_call.1} parent=0
    _
  %s5 = ssub.s32 1, %s3
  %s6 = scalar_select 0, %s5, %s3
  $region1: #{tpu_custom_call.1} parent=0
    #allocation2 [shape = 'u8[8192]{0}', space=vmem, size = 0x2000, scoped, tag = 'input window, operand 0, single buffered']
    #allocation3 [shape = 's32[1]{0}', space=sflag, size = 0x4, scoped, tag = 'scoped memory for tpu_custom_call.1']
    #allocation4 [shape = 's32[1]{0}', space=sflag, size = 0x4, scoped, tag = 'scoped memory for tpu_custom_call.1']
    #allocation5 [shape = 'u8[65536]{0}', space=vmem, size = 0x10000, scoped, tag = 'input window, operand 1, single buffered']
    #allocation6 [shape = 's32[1]{0}', space=sflag, size = 0x4, scoped, tag = 'scoped memory for tpu_custom_call.1']
    #allocation7 [shape = 'u8[4096]{0}', space=vmem, size = 0x1000, scoped, tag = 'output window, operand 0, single buffered']
    %7 = vsyncpa [#allocation3], 0
    %8 = vsyncpa [#allocation6], 0
    %9 = vsyncpa [#allocation4], 0
    // Predicated region
    $region2: #{tpu_custom_call.1} parent=1 // pred_check
      _
    $region3: #{tpu_custom_call.1} parent=1 // pred_check_branch
      %11 = sbr.rel (0) target = $region5
    $region4: #{tpu_custom_call.1} parent=1 // pred_region
      %s13 = ssub.s32 256, 256
      %14 = vsyncadd [#allocation3], %s13
      %s16 = sshll.u32 [#allocation2], 4
      %s17 = int_to_ptr.vmem [resolvable:$true] %s16
      %19 = dma.hbm_to_vmem [thread:$0]  %s0, 256, %s17, [#allocation3]
    $region5: #{tpu_custom_call.1} parent=1 // pred_fallthru
      _
    // Predicated region
    $region6: #{tpu_custom_call.1} parent=1 // pred_check
      _
    $region7: #{tpu_custom_call.1} parent=1 // pred_check_branch
      %21 = sbr.rel (0) target = $region9
    $region8: #{tpu_custom_call.1} parent=1 // pred_region
      %s23 = ssub.s32 2048, 2048
      %24 = vsyncadd [#allocation6], %s23
      %s25 = sshll.u32 [#allocation5], 4
      %s26 = int_to_ptr.vmem [resolvable:$true] %s25
      %31 = dma.hbm_to_vmem [thread:$0]  %s1, 2048, %s26, [#allocation6], 64, 64, 4
    $region9: #{tpu_custom_call.1} parent=1 // pred_fallthru
      _
    // Predicated region
    $region10: #{tpu_custom_call.1} parent=1 // pred_check
      _
    $region11: #{tpu_custom_call.1} parent=1 // pred_check_branch
      %33 = sbr.rel (0) target = $region13
    $region12: #{tpu_custom_call.1} parent=1 // pred_region
      %34 = dma.done [#allocation3], 256
    $region13: #{tpu_custom_call.1} parent=1 // pred_fallthru
      _
    // Predicated region
    $region14: #{tpu_custom_call.1} parent=1 // pred_check
      _
    $region15: #{tpu_custom_call.1} parent=1 // pred_check_branch
      %36 = sbr.rel (0) target = $region17
    $region16: #{tpu_custom_call.1} parent=1 // pred_region
      %37 = dma.done [#allocation6], 2048
    $region17: #{tpu_custom_call.1} parent=1 // pred_fallthru
      _
    %v39 = vld [vmem:[#allocation2] sm:$0xff]
    %v40 = vld [vmem:[#allocation2 + $0x8] sm:$0xff]
    %v41 = vpack.c.bf16 %v39, %v39
    %v42 = vpack.c.bf16 %v40, %v40
    %v43 = vld [vmem:[#allocation5] sm:$0xf]
    %v44 = vld [vmem:[#allocation5 + $0x4] sm:$0xf]
    %v45 = vld [vmem:[#allocation5 + $0x8] sm:$0xf]
    %v46 = vld [vmem:[#allocation5 + $0xc] sm:$0xf]
    %v47 = vld [vmem:[#allocation5 + $0x10] sm:$0xf]
    %v48 = vld [vmem:[#allocation5 + $0x14] sm:$0xf]
    %v49 = vld [vmem:[#allocation5 + $0x18] sm:$0xf]
    %v50 = vld [vmem:[#allocation5 + $0x1c] sm:$0xf]
    %v51 = vld [vmem:[#allocation5 + $0x20] sm:$0xf]
    %v52 = vld [vmem:[#allocation5 + $0x24] sm:$0xf]
    %v53 = vld [vmem:[#allocation5 + $0x28] sm:$0xf]
    %v54 = vld [vmem:[#allocation5 + $0x2c] sm:$0xf]
    %v55 = vld [vmem:[#allocation5 + $0x30] sm:$0xf]
    %v56 = vld [vmem:[#allocation5 + $0x34] sm:$0xf]
    %v57 = vld [vmem:[#allocation5 + $0x38] sm:$0xf]
    %v58 = vld [vmem:[#allocation5 + $0x3c] sm:$0xf]
    %v59 = vld [vmem:[#allocation5 + $0x40] sm:$0xf]
    %v60 = vld [vmem:[#allocation5 + $0x44] sm:$0xf]
    %v61 = vld [vmem:[#allocation5 + $0x48] sm:$0xf]
    %v62 = vld [vmem:[#allocation5 + $0x4c] sm:$0xf]
    %v63 = vld [vmem:[#allocation5 + $0x50] sm:$0xf]
    %v64 = vld [vmem:[#allocation5 + $0x54] sm:$0xf]
    %v65 = vld [vmem:[#allocation5 + $0x58] sm:$0xf]
    %v66 = vld [vmem:[#allocation5 + $0x5c] sm:$0xf]
    %v67 = vld [vmem:[#allocation5 + $0x60] sm:$0xf]
    %v68 = vld [vmem:[#allocation5 + $0x64] sm:$0xf]
    %v69 = vld [vmem:[#allocation5 + $0x68] sm:$0xf]
    %v70 = vld [vmem:[#allocation5 + $0x6c] sm:$0xf]
    %v71 = vld [vmem:[#allocation5 + $0x70] sm:$0xf]
    %v72 = vld [vmem:[#allocation5 + $0x74] sm:$0xf]
    %v73 = vld [vmem:[#allocation5 + $0x78] sm:$0xf]
    %v74 = vld [vmem:[#allocation5 + $0x7c] sm:$0xf]
    %v107 = vunpack.c.l.b16 %v43
    %v108 = vunpack.c.l.b16 %v44
    %v109 = vunpack.c.l.b16 %v45
    %v110 = vunpack.c.l.b16 %v46
    %v111 = vunpack.c.l.b16 %v47
    %v112 = vunpack.c.l.b16 %v48
    %v113 = vunpack.c.l.b16 %v49
    %v114 = vunpack.c.l.b16 %v50
    %v115 = vunpack.c.l.b16 %v51
    %v116 = vunpack.c.l.b16 %v52
    %v117 = vunpack.c.l.b16 %v53
    %v118 = vunpack.c.l.b16 %v54
    %v119 = vunpack.c.l.b16 %v55
    %v120 = vunpack.c.l.b16 %v56
    %v121 = vunpack.c.l.b16 %v57
    %v122 = vunpack.c.l.b16 %v58
    %v123 = vunpack.c.l.b16 %v59
    %v124 = vunpack.c.l.b16 %v60
    %v125 = vunpack.c.l.b16 %v61
    %v126 = vunpack.c.l.b16 %v62
    %v127 = vunpack.c.l.b16 %v63
    %v128 = vunpack.c.l.b16 %v64
    %v129 = vunpack.c.l.b16 %v65
    %v130 = vunpack.c.l.b16 %v66
    %v131 = vunpack.c.l.b16 %v67
    %v132 = vunpack.c.l.b16 %v68
    %v133 = vunpack.c.l.b16 %v69
    %v134 = vunpack.c.l.b16 %v70
    %v135 = vunpack.c.l.b16 %v71
    %v136 = vunpack.c.l.b16 %v72
    %v137 = vunpack.c.l.b16 %v73
    %v138 = vunpack.c.l.b16 %v74
    %v139 = vpack.c.b16 %v108, %v107
    %v140 = vpack.c.b16 %v110, %v109
    %v141 = vpack.c.b16 %v112, %v111
    %v142 = vpack.c.b16 %v114, %v113
    %v143 = vpack.c.b16 %v116, %v115
    %v144 = vpack.c.b16 %v118, %v117
    %v145 = vpack.c.b16 %v120, %v119
    %v146 = vpack.c.b16 %v122, %v121
    %v147 = vpack.c.b16 %v124, %v123
    %v148 = vpack.c.b16 %v126, %v125
    %v149 = vpack.c.b16 %v128, %v127
    %v150 = vpack.c.b16 %v130, %v129
    %v151 = vpack.c.b16 %v132, %v131
    %v152 = vpack.c.b16 %v134, %v133
    %v153 = vpack.c.b16 %v136, %v135
    %v154 = vpack.c.b16 %v138, %v137
    %171 = vmatprep.subr.bf16.mxu0 0
    %172 = vmatpush1.bf16.msra.mxu0 %v139
    %173 = vmatprep.subr.bf16.mxu0 0
    %174 = vmatpush1.bf16.msra.mxu0 %v140
    %175 = vmatprep.subr.bf16.mxu0 0
    %176 = vmatpush1.bf16.msra.mxu0 %v141
    %177 = vmatprep.subr.bf16.mxu0 0
    %178 = vmatpush1.bf16.msra.mxu0 %v142
    %179 = vmatprep.subr.bf16.mxu0 0
    %180 = vmatpush1.bf16.msra.mxu0 %v143
    %181 = vmatprep.subr.bf16.mxu0 0
    %182 = vmatpush1.bf16.msra.mxu0 %v144
    %183 = vmatprep.subr.bf16.mxu0 0
    %184 = vmatpush1.bf16.msra.mxu0 %v145
    %185 = vmatprep.subr.bf16.mxu0 0
    %186 = vmatpush1.bf16.msra.mxu0 %v146
    %187 = vmatprep.subr.bf16.mxu0 0
    %188 = vmatpush1.bf16.msra.mxu0 %v147
    %189 = vmatprep.subr.bf16.mxu0 0
    %190 = vmatpush1.bf16.msra.mxu0 %v148
    %191 = vmatprep.subr.bf16.mxu0 0
    %192 = vmatpush1.bf16.msra.mxu0 %v149
    %193 = vmatprep.subr.bf16.mxu0 0
    %194 = vmatpush1.bf16.msra.mxu0 %v150
    %195 = vmatprep.subr.bf16.mxu0 0
    %196 = vmatpush1.bf16.msra.mxu0 %v151
    %197 = vmatprep.subr.bf16.mxu0 0
    %198 = vmatpush1.bf16.msra.mxu0 %v152
    %199 = vmatprep.subr.bf16.mxu0 0
    %200 = vmatpush1.bf16.msra.mxu0 %v153
    %201 = vmatprep.subr.bf16.mxu0 0
    %202 = vmatpush1.bf16.msra.mxu0 %v154
    %203 = vmatprep.mubr.bf16.mxu0 %v42
    %204 = vmatmul.mubr.bf16.gmra.mrb[0].mxu0 %v41
    %v205 = vpop.f32.mrb[0].mxu0
    %v206 = vadd.f32 0.0, %v205
    %v207 = vpop.f32.mrb[0].mxu0
    %v208 = vpop.f32.mrb[0].mxu0
    %v209 = vpop.f32.mrb[0].mxu0
    %210 = vdwg.mxu0
    %211 = vst [vmem:[#allocation7] sm:$0xff] %v206
    // Predicated region
    $region18: #{tpu_custom_call.1} parent=1 // pred_check
      _
    $region19: #{tpu_custom_call.1} parent=1 // pred_check_branch
      %213 = sbr.rel (0) target = $region21
    $region20: #{tpu_custom_call.1} parent=1 // pred_region
      %s215 = ssub.s32 128, 128
      %216 = vsyncadd [#allocation4], %s215
      %s218 = sshll.u32 [#allocation7], 4
      %s219 = int_to_ptr.vmem [resolvable:$true] %s218
      %221 = dma.vmem_to_hbm [thread:$0]  %s219, 128, %s2, [#allocation4]
    $region21: #{tpu_custom_call.1} parent=1 // pred_fallthru
      _
    // Predicated region
    $region22: #{tpu_custom_call.1} parent=1 // pred_check
      _
    $region23: #{tpu_custom_call.1} parent=1 // pred_check_branch
      %223 = sbr.rel (0) target = $region25
    $region24: #{tpu_custom_call.1} parent=1 // pred_region
      %224 = dma.done [#allocation4], 128
    $region25: #{tpu_custom_call.1} parent=1 // pred_fallthru
      _
    %225 = vsyncpa [#allocation3], 1
    %226 = vsyncpa [#allocation6], 1
    %227 = vsyncpa [#allocation4], 1

</llo_original>
